<compile_context>
chip_gen: v7x
topology: tpu7x:2x2x1
jax: 0.10.0
libtpu: 0.0.40
codegen_flags: <defaults>
</compile_context>

<pallas_src>
import math
import functools

import jax
import jax.numpy as jnp
from jax import lax
from jax.experimental import pallas as pl
from jax.experimental.pallas import tpu as pltpu


def _mha_relpos_kernel(x_ref, wqkv_ref, bqkv_ref, wp_ref, bp_ref, bias_ref,
                       o_ref, ctx_ref, *, num_groups, group_heads, head_dim):
    hg = pl.program_id(1)
    f32 = jnp.float32
    bf16 = jnp.bfloat16
    G = group_heads
    hd = head_dim
    ghd = G * hd

    dn_proj = (((2,), (0,)), ((), ()))     # (TB,N,K) x (K,M)   -> (TB,N,M)
    dn_nt = (((2,), (2,)), ((0,), (0,)))   # bqd,bkd            -> bqk
    dn_pv = (((2,), (1,)), ((0,), (0,)))   # bqk,bkd            -> bqd

    # ---- fused Q/K/V projection for this head group (scale folded into Wq/bq) ----
    x = x_ref[...]                                       # (TB, N, C) bf16, resident over hg
    qkv = lax.dot_general(x, wqkv_ref[hg], dn_proj, preferred_element_type=f32)
    qkv = (qkv + bqkv_ref[hg]).astype(bf16)              # (TB, N, 3*G*hd)

    q_g = qkv[:, :, 0 * ghd:1 * ghd]
    k_g = qkv[:, :, 1 * ghd:2 * ghd]
    v_g = qkv[:, :, 2 * ghd:3 * ghd]

    # ---- attention for each head in the group (static unroll) ----
    outs = []
    for g in range(G):
        sl = slice(g * hd, (g + 1) * hd)
        q_h = q_g[:, :, sl]
        k_h = k_g[:, :, sl]
        v_h = v_g[:, :, sl]
        s = lax.dot_general(q_h, k_h, dn_nt, preferred_element_type=f32)   # (TB, N, N)
        s = s + bias_ref[0, g]                           # bf16 bias broadcasts -> f32
        m = jnp.max(s, axis=-1, keepdims=True)
        p = jnp.exp(s - m)                               # f32 softmax numerator
        l = jnp.sum(p, axis=-1, keepdims=True)
        oh = lax.dot_general(p.astype(bf16), v_h, dn_pv, preferred_element_type=f32)
        # Deferred normalization (N*hd multiplies instead of N*N); approx
        # reciprocal runs on the EUP slot (~1e-3 rel error, within tolerance).
        oh = oh * pl.reciprocal(l, approx=True)
        outs.append(oh.astype(bf16))
    group_ctx = outs[0] if G == 1 else jnp.concatenate(outs, axis=-1)      # (TB, N, G*hd)

    # Stash this group's context; the output block is written exactly once below.
    ctx_ref[hg] = group_ctx

    @pl.when(hg == num_groups - 1)
    def _project():
        acc = lax.dot_general(ctx_ref[0], wp_ref[0], dn_proj,
                              preferred_element_type=f32)
        for gg in range(1, num_groups):                  # static unroll
            acc = acc + lax.dot_general(ctx_ref[gg], wp_ref[gg], dn_proj,
                                        preferred_element_type=f32)
        o_ref[...] = (acc + bp_ref[...]).astype(o_ref.dtype)


def _vmem_capacity_bytes():
    """Per-core VMEM capacity; conservative (v7x) fallback if the query fails."""
    try:
        return int(pltpu.get_tpu_info().vmem_capacity_bytes)
    except Exception:
        return 64 * 1024 * 1024


def _estimate_vmem(tb, g, N, C, out_itemsize):
    """Rough live-bytes estimate for a (tb, g) tiling choice."""
    rows = tb * N
    ghd = g * C // (C // 1)  # placeholder, overwritten below (kept simple)
    return 0


def _pick_tiling(B, N, C, H, hd, out_itemsize, vmem_cap):
    """Pick (batch tile TB, heads-per-step G) from an actual VMEM budget."""
    budget = int(vmem_cap * 0.6)   # headroom for compiler / internal scratch

    def est(tb, g):
        rows = tb * N
        ghd = g * hd
        b = 0
        b += 2 * rows * C * 2                 # x block, bf16, double-buffered
        b += 2 * rows * C * out_itemsize      # output block, double-buffered
        b += 2 * g * N * N * 2                # rel-pos bias block, bf16, double-buffered
        b += 4 * C * C * 2                    # resident qkv + proj weights (bf16)
        b += rows * C * 2                     # per-head-group context scratch (bf16)
        b += rows * 3 * ghd * (4 + 2)         # per-step qkv values (f32 + bf16 copy)
        b += 2 * rows * N * 4                 # live s / p tiles (f32)
        b += rows * C * 4                     # final f32 accumulator
        return b

    divs_b = [d for d in range(1, B + 1) if B % d == 0]
    divs_h = [d for d in range(1, H + 1) if H % d == 0]
    feasible = [(tb, g) for tb in divs_b for g in divs_h if est(tb, g) <= budget]
    if not feasible:
        feasible = [(1, 1)]
    # Keep >= 2 batch tiles whenever B permits (v7x has 2 TensorCores on the
    # "parallel" axis); no effect on v5e/v6e.
    multi = [c for c in feasible if B // c[0] >= 2] or feasible
    # Prefer lane-dense head groups (G*hd >= 128) when the budget allows.
    dense = [c for c in multi if c[1] * hd >= 128] or multi

    def score(c):
        tb, g = c
        return (min(tb * N, 2048), g, tb)

    return max(dense, key=score)


def mha_relpos(x, wqkv_t, bqkv, wproj_t, bproj, rel_pos_bias,
               num_heads, max_seq_len, *, block_b=None, group_heads=None):
    """x: (B, N, C). wqkv_t: (C, 3C) (= qkv.weight.T). wproj_t: (C, C) (= proj.weight.T).
    rel_pos_bias: (2*max_seq_len-1, H)."""
    B, N, C = x.shape
    H = num_heads
    hd = C // H
    assert C % H == 0, "dim must be divisible by num_heads"
    assert N <= max_seq_len, "sequence length exceeds max_seq_len (rel-pos table)"
    scale = hd ** (-0.5)

    out_dtype = x.dtype
    out_itemsize = jnp.dtype(out_dtype).itemsize
    vmem_cap = _vmem_capacity_bytes()
    tb, g = _pick_tiling(B, N, C, H, hd, out_itemsize, vmem_cap)
    if block_b is not None:
        tb = block_b
    if group_heads is not None:
        g = group_heads
    assert B % tb == 0 and H % g == 0
    hg = H // g
    ghd = g * hd

    # ---- glue: fold softmax scale into the Q columns of the fused QKV params ----
    col_scale = jnp.concatenate([jnp.full((C,), scale, jnp.float32),
                                 jnp.ones((2 * C,), jnp.float32)])
    wqkv_s = wqkv_t.astype(jnp.float32) * col_scale[None, :]
    bqkv_s = bqkv.astype(jnp.float32) * col_scale

    # Head-group-major fused QKV weight: (HG, C, 3*G*hd), columns [q | k | v] per group.
    w5 = wqkv_s.reshape(C, 3, hg, g, hd)
    wqkv_g = jnp.transpose(w5, (2, 0, 1, 3, 4)).reshape(hg, C, 3 * ghd).astype(jnp.bfloat16)
    b5 = bqkv_s.reshape(3, hg, g, hd)
    bqkv_g = jnp.transpose(b5, (1, 0, 2, 3)).reshape(hg, 1, 3 * ghd)          # f32

    wp_g = wproj_t.reshape(hg, ghd, C).astype(jnp.bfloat16)                   # (HG, G*hd, C)
    bp = bproj.reshape(1, C).astype(jnp.float32)

    # Relative-position bias gathered to (HG, G, N, N) bf16, streamed per head group.
    pos = jnp.arange(N)[:, None] - jnp.arange(N)[None, :]
    rel_idx = pos + max_seq_len - 1
    bias = jnp.transpose(rel_pos_bias[rel_idx], (2, 0, 1))                    # (H, N, N)
    bias = bias.reshape(hg, g, N, N).astype(jnp.bfloat16)

    x_bf = x.astype(jnp.bfloat16)

    grid = (B // tb, hg)
    kernel = functools.partial(_mha_relpos_kernel,
                               num_groups=hg, group_heads=g, head_dim=hd)

    flops = int(2 * B * N * C * 3 * C          # qkv projection
                + 4 * B * N * N * C            # qk^T + attn@v over all heads
                + 2 * B * N * C * C)           # output projection
    transcendentals = int(B * H * N * N)
    bytes_accessed = int(x_bf.size * 2 + B * N * C * out_itemsize
                         + (wqkv_g.size + wp_g.size) * 2
                         + bias.size * 2 * (B // tb))

    y = pl.pallas_call(
        kernel,
        out_shape=jax.ShapeDtypeStruct((B, N, C), out_dtype),
        grid_spec=pltpu.PrefetchScalarGridSpec(
            num_scalar_prefetch=0,
            grid=grid,
            in_specs=[
                pl.BlockSpec((tb, N, C), lambda b, h: (b, 0, 0)),          # x (resident across h)
                pl.BlockSpec((hg, C, 3 * ghd), lambda b, h: (0, 0, 0)),    # fused QKV weight (resident)
                pl.BlockSpec((hg, 1, 3 * ghd), lambda b, h: (0, 0, 0)),    # fused QKV bias (resident)
                pl.BlockSpec((hg, ghd, C), lambda b, h: (0, 0, 0)),        # proj weight (resident)
                pl.BlockSpec((1, C), lambda b, h: (0, 0)),                 # proj bias (resident)
                pl.BlockSpec((1, g, N, N), lambda b, h: (h, 0, 0, 0)),     # rel-pos bias (streamed)
            ],
            out_specs=pl.BlockSpec((tb, N, C), lambda b, h: (b, 0, 0)),
            scratch_shapes=[pltpu.VMEM((hg, tb, N, ghd), jnp.bfloat16)],   # per-group context
        ),
        compiler_params=pltpu.CompilerParams(
            dimension_semantics=("parallel", "arbitrary"),
            vmem_limit_bytes=int(vmem_cap * 0.75)),
        cost_estimate=pl.CostEstimate(flops=flops,
                                      transcendentals=transcendentals,
                                      bytes_accessed=bytes_accessed),
    )(x_bf, wqkv_g, bqkv_g, wp_g, bp, bias)

    return y


def mha_relpos_reference(x, wqkv_t, bqkv, wproj_t, bproj, rel_pos_bias,
                         num_heads, max_seq_len):
    """Pure-JAX f32 reference mirroring the PyTorch forward (mask=None, eval)."""
    B, N, C = x.shape
    hd = C // num_heads
    scale = hd ** (-0.5)
    qkv = x @ wqkv_t + bqkv                                       # (B, N, 3C)
    qkv = qkv.reshape(B, N, 3, num_heads, hd)
    qkv = jnp.transpose(qkv, (2, 0, 3, 1, 4))                     # (3, B, H, N, hd)
    q, k, v = qkv[0], qkv[1], qkv[2]
    q = q * scale
    attn = jnp.einsum("bhnd,bhmd->bhnm", q, k)                    # (B, H, N, N)
    positions = jnp.arange(N)[:, None] - jnp.arange(N)[None, :]
    rel_idx = positions + max_seq_len - 1
    bias = jnp.transpose(rel_pos_bias[rel_idx], (2, 0, 1))        # (H, N, N)
    attn = attn + bias[None]
    attn = jax.nn.softmax(attn.astype(jnp.float32), axis=-1)
    out = jnp.einsum("bhnm,bhmd->bhnd", attn, v)                  # (B, H, N, hd)
    out = jnp.transpose(out, (0, 2, 1, 3)).reshape(B, N, C)
    return out @ wproj_t + bproj


if __name__ == "__main__":
    # Small shapes consistent with the module.
    B, N, C = 2, 8, 32
    num_heads = 4
    max_seq_len = 16

    key = jax.random.PRNGKey(0)
    k_x, k_wqkv, k_bqkv, k_wproj, k_bproj, k_rel = jax.random.split(key, 6)

    x = jax.random.normal(k_x, (B, N, C), dtype=jnp.float32)

    # Deterministic parameter init (PyTorch Linear-style uniform bounds).
    bound = 1.0 / math.sqrt(C)
    wqkv_t = jax.random.uniform(k_wqkv, (C, 3 * C), jnp.float32, -bound, bound)
    bqkv = jax.random.uniform(k_bqkv, (3 * C,), jnp.float32, -bound, bound)
    wproj_t = jax.random.uniform(k_wproj, (C, C), jnp.float32, -bound, bound)
    bproj = jax.random.uniform(k_bproj, (C,), jnp.float32, -bound, bound)
    # trunc_normal(std=0.02), approximated with truncated_normal in [-2, 2].
    rel_pos_bias = 0.02 * jax.random.truncated_normal(
        k_rel, -2.0, 2.0, (2 * max_seq_len - 1, num_heads), jnp.float32)

    # TODO(synk): dropout omitted (eval-mode identity); mask=None path only.

    y = mha_relpos(x, wqkv_t, bqkv, wproj_t, bproj, rel_pos_bias,
                   num_heads, max_seq_len)
    y = jax.block_until_ready(y)

    y_ref = mha_relpos_reference(x, wqkv_t, bqkv, wproj_t, bproj,
                                 rel_pos_bias, num_heads, max_seq_len)
    assert y.shape == (B, N, C)
    # bf16 matmul inputs / f32 accumulation / approx reciprocal -> loose tolerance.
    assert jnp.allclose(y, y_ref, atol=5e-2, rtol=5e-2), "mismatch vs reference"

    print("KERNEL_OK")
</pallas_src>

<mosaic_0001>
module attributes {stable_mosaic.version = 11 : i64} {
  func.func @_mha_relpos_kernel(%arg0: i32, %arg1: i32, %arg2: memref<1x8x32xbf16, #tpu.memory_space<vmem>>, %arg3: memref<1x32x96xbf16, #tpu.memory_space<vmem>>, %arg4: memref<1x1x96xf32, #tpu.memory_space<vmem>>, %arg5: memref<1x32x32xbf16, #tpu.memory_space<vmem>>, %arg6: memref<1x32xf32, #tpu.memory_space<vmem>>, %arg7: memref<1x4x8x8xbf16, #tpu.memory_space<vmem>>, %arg8: memref<1x8x32xf32, #tpu.memory_space<vmem>>, %arg9: memref<1x1x8x32xbf16, #tpu.memory_space<vmem>>) attributes {dimension_semantics = [#tpu.dimension_semantics<parallel>, #tpu.dimension_semantics<arbitrary>], iteration_bounds = array<i64: 2, 1>, scalar_prefetch = 0 : i64, scratch_operands = 1 : i64, tpu.core_type = #tpu.core_type<tc>, window_params = [{transform_indices = @transform_0, window_bounds = array<i64: 1, 8, 32>}, {pipeline_mode = #tpu.pipeline_mode<synchronous>, transform_indices = @transform_1, window_bounds = array<i64: 1, 32, 96>}, {pipeline_mode = #tpu.pipeline_mode<synchronous>, transform_indices = @transform_2, window_bounds = array<i64: 1, 1, 96>}, {pipeline_mode = #tpu.pipeline_mode<synchronous>, transform_indices = @transform_3, window_bounds = array<i64: 1, 32, 32>}, {pipeline_mode = #tpu.pipeline_mode<synchronous>, transform_indices = @transform_4, window_bounds = array<i64: 1, 32>}, {transform_indices = @transform_5, window_bounds = array<i64: 1, 4, 8, 8>}, {transform_indices = @transform_6, window_bounds = array<i64: 1, 8, 32>}]} {
    %c0 = arith.constant 0 : index
    %c0_0 = arith.constant 0 : index
    %c0_1 = arith.constant 0 : index
    %0 = vector.load %arg2[%c0, %c0_0, %c0_1] : memref<1x8x32xbf16, #tpu.memory_space<vmem>>, vector<1x8x32xbf16>
    %1 = arith.index_cast %arg1 : i32 to index
    %c0_2 = arith.constant 0 : index
    %c0_3 = arith.constant 0 : index
    %2 = vector.load %arg3[%1, %c0_2, %c0_3] : memref<1x32x96xbf16, #tpu.memory_space<vmem>>, vector<1x32x96xbf16>
    %3 = vector.shape_cast %2 : vector<1x32x96xbf16> to vector<32x96xbf16>
    %cst = arith.constant dense<0.000000e+00> : vector<1x8x96xf32>
    %4 = tpu.matmul %0, %3, %cst {dimension_numbers = #tpu.dot_dimension_numbers<[2], [0], [0, 1], [1], [0, 0, 0, 1, 1, 1], [], []>} : vector<1x8x32xbf16>, vector<32x96xbf16>, vector<1x8x96xf32> -> vector<1x8x96xf32>
    %5 = arith.index_cast %arg1 : i32 to index
    %c0_4 = arith.constant 0 : index
    %c0_5 = arith.constant 0 : index
    %6 = vector.load %arg4[%5, %c0_4, %c0_5] : memref<1x1x96xf32, #tpu.memory_space<vmem>>, vector<1x1x96xf32>
    %7 = vector.shape_cast %6 : vector<1x1x96xf32> to vector<1x96xf32>
    %8 = vector.shape_cast %7 : vector<1x96xf32> to vector<1x1x96xf32>
    %9 = vector.broadcast %8 : vector<1x1x96xf32> to vector<1x8x96xf32>
    %10 = arith.addf %4, %9 : vector<1x8x96xf32>
    %11 = arith.truncf %10 : vector<1x8x96xf32> to vector<1x8x96xbf16>
    %12 = vector.extract_strided_slice %11 {offsets = [0, 0, 0], sizes = [1, 8, 32], strides = [1, 1, 1]} : vector<1x8x96xbf16> to vector<1x8x32xbf16>
    %13 = vector.extract_strided_slice %11 {offsets = [0, 0, 32], sizes = [1, 8, 32], strides = [1, 1, 1]} : vector<1x8x96xbf16> to vector<1x8x32xbf16>
    %14 = vector.extract_strided_slice %11 {offsets = [0, 0, 64], sizes = [1, 8, 32], strides = [1, 1, 1]} : vector<1x8x96xbf16> to vector<1x8x32xbf16>
    %15 = vector.extract_strided_slice %12 {offsets = [0, 0, 0], sizes = [1, 8, 8], strides = [1, 1, 1]} : vector<1x8x32xbf16> to vector<1x8x8xbf16>
    %16 = vector.extract_strided_slice %13 {offsets = [0, 0, 0], sizes = [1, 8, 8], strides = [1, 1, 1]} : vector<1x8x32xbf16> to vector<1x8x8xbf16>
    %17 = vector.extract_strided_slice %14 {offsets = [0, 0, 0], sizes = [1, 8, 8], strides = [1, 1, 1]} : vector<1x8x32xbf16> to vector<1x8x8xbf16>
    %cst_6 = arith.constant dense<0.000000e+00> : vector<1x8x8xf32>
    %18 = tpu.matmul %15, %16, %cst_6 {dimension_numbers = #tpu.dot_dimension_numbers<[2], [2], [1], [1], [0, 0, 0, 1, 1, 1], [0], [0]>} : vector<1x8x8xbf16>, vector<1x8x8xbf16>, vector<1x8x8xf32> -> vector<1x8x8xf32>
    %c0_7 = arith.constant 0 : index
    %c0_8 = arith.constant 0 : index
    %c0_9 = arith.constant 0 : index
    %c0_10 = arith.constant 0 : index
    %19 = vector.load %arg7[%c0_7, %c0_8, %c0_9, %c0_10] : memref<1x4x8x8xbf16, #tpu.memory_space<vmem>>, vector<1x1x8x8xbf16>
    %20 = vector.shape_cast %19 : vector<1x1x8x8xbf16> to vector<8x8xbf16>
    %21 = arith.extf %20 : vector<8x8xbf16> to vector<8x8xf32>
    %22 = vector.shape_cast %21 : vector<8x8xf32> to vector<1x8x8xf32>
    %23 = arith.addf %18, %22 : vector<1x8x8xf32>
    %cst_11 = arith.constant dense<0xFF800000> : vector<1x8xf32>
    %24 = vector.multi_reduction <maximumf>, %23, %cst_11 [2] : vector<1x8x8xf32> to vector<1x8xf32>
    %25 = vector.shape_cast %24 : vector<1x8xf32> to vector<1x8x1xf32>
    %26 = vector.broadcast %25 : vector<1x8x1xf32> to vector<1x8x8xf32>
    %27 = arith.subf %23, %26 : vector<1x8x8xf32>
    %28 = math.exp %27 : vector<1x8x8xf32>
    %cst_12 = arith.constant dense<0.000000e+00> : vector<1x8xf32>
    %29 = vector.multi_reduction <add>, %28, %cst_12 [2] : vector<1x8x8xf32> to vector<1x8xf32>
    %30 = vector.shape_cast %29 : vector<1x8xf32> to vector<1x8x1xf32>
    %31 = arith.truncf %28 : vector<1x8x8xf32> to vector<1x8x8xbf16>
    %cst_13 = arith.constant dense<0.000000e+00> : vector<1x8x8xf32>
    %32 = tpu.matmul %31, %17, %cst_13 {dimension_numbers = #tpu.dot_dimension_numbers<[2], [1], [1], [2], [0, 0, 0, 1, 1, 2], [0], [0]>} : vector<1x8x8xbf16>, vector<1x8x8xbf16>, vector<1x8x8xf32> -> vector<1x8x8xf32>
    %33 = tpu.reciprocal %30 {approx = true} : vector<1x8x1xf32> -> vector<1x8x1xf32>
    %34 = vector.broadcast %33 : vector<1x8x1xf32> to vector<1x8x8xf32>
    %35 = arith.mulf %32, %34 : vector<1x8x8xf32>
    %36 = arith.truncf %35 : vector<1x8x8xf32> to vector<1x8x8xbf16>
    %37 = vector.extract_strided_slice %12 {offsets = [0, 0, 8], sizes = [1, 8, 8], strides = [1, 1, 1]} : vector<1x8x32xbf16> to vector<1x8x8xbf16>
    %38 = vector.extract_strided_slice %13 {offsets = [0, 0, 8], sizes = [1, 8, 8], strides = [1, 1, 1]} : vector<1x8x32xbf16> to vector<1x8x8xbf16>
    %39 = vector.extract_strided_slice %14 {offsets = [0, 0, 8], sizes = [1, 8, 8], strides = [1, 1, 1]} : vector<1x8x32xbf16> to vector<1x8x8xbf16>
    %cst_14 = arith.constant dense<0.000000e+00> : vector<1x8x8xf32>
    %40 = tpu.matmul %37, %38, %cst_14 {dimension_numbers = #tpu.dot_dimension_numbers<[2], [2], [1], [1], [0, 0, 0, 1, 1, 1], [0], [0]>} : vector<1x8x8xbf16>, vector<1x8x8xbf16>, vector<1x8x8xf32> -> vector<1x8x8xf32>
    %c0_15 = arith.constant 0 : index
    %c1 = arith.constant 1 : index
    %c0_16 = arith.constant 0 : index
    %c0_17 = arith.constant 0 : index
    %41 = vector.load %arg7[%c0_15, %c1, %c0_16, %c0_17] : memref<1x4x8x8xbf16, #tpu.memory_space<vmem>>, vector<1x1x8x8xbf16>
    %42 = vector.shape_cast %41 : vector<1x1x8x8xbf16> to vector<8x8xbf16>
    %43 = arith.extf %42 : vector<8x8xbf16> to vector<8x8xf32>
    %44 = vector.shape_cast %43 : vector<8x8xf32> to vector<1x8x8xf32>
    %45 = arith.addf %40, %44 : vector<1x8x8xf32>
    %cst_18 = arith.constant dense<0xFF800000> : vector<1x8xf32>
    %46 = vector.multi_reduction <maximumf>, %45, %cst_18 [2] : vector<1x8x8xf32> to vector<1x8xf32>
    %47 = vector.shape_cast %46 : vector<1x8xf32> to vector<1x8x1xf32>
    %48 = vector.broadcast %47 : vector<1x8x1xf32> to vector<1x8x8xf32>
    %49 = arith.subf %45, %48 : vector<1x8x8xf32>
    %50 = math.exp %49 : vector<1x8x8xf32>
    %cst_19 = arith.constant dense<0.000000e+00> : vector<1x8xf32>
    %51 = vector.multi_reduction <add>, %50, %cst_19 [2] : vector<1x8x8xf32> to vector<1x8xf32>
    %52 = vector.shape_cast %51 : vector<1x8xf32> to vector<1x8x1xf32>
    %53 = arith.truncf %50 : vector<1x8x8xf32> to vector<1x8x8xbf16>
    %cst_20 = arith.constant dense<0.000000e+00> : vector<1x8x8xf32>
    %54 = tpu.matmul %53, %39, %cst_20 {dimension_numbers = #tpu.dot_dimension_numbers<[2], [1], [1], [2], [0, 0, 0, 1, 1, 2], [0], [0]>} : vector<1x8x8xbf16>, vector<1x8x8xbf16>, vector<1x8x8xf32> -> vector<1x8x8xf32>
    %55 = tpu.reciprocal %52 {approx = true} : vector<1x8x1xf32> -> vector<1x8x1xf32>
    %56 = vector.broadcast %55 : vector<1x8x1xf32> to vector<1x8x8xf32>
    %57 = arith.mulf %54, %56 : vector<1x8x8xf32>
    %58 = arith.truncf %57 : vector<1x8x8xf32> to vector<1x8x8xbf16>
    %59 = vector.extract_strided_slice %12 {offsets = [0, 0, 16], sizes = [1, 8, 8], strides = [1, 1, 1]} : vector<1x8x32xbf16> to vector<1x8x8xbf16>
    %60 = vector.extract_strided_slice %13 {offsets = [0, 0, 16], sizes = [1, 8, 8], strides = [1, 1, 1]} : vector<1x8x32xbf16> to vector<1x8x8xbf16>
    %61 = vector.extract_strided_slice %14 {offsets = [0, 0, 16], sizes = [1, 8, 8], strides = [1, 1, 1]} : vector<1x8x32xbf16> to vector<1x8x8xbf16>
    %cst_21 = arith.constant dense<0.000000e+00> : vector<1x8x8xf32>
    %62 = tpu.matmul %59, %60, %cst_21 {dimension_numbers = #tpu.dot_dimension_numbers<[2], [2], [1], [1], [0, 0, 0, 1, 1, 1], [0], [0]>} : vector<1x8x8xbf16>, vector<1x8x8xbf16>, vector<1x8x8xf32> -> vector<1x8x8xf32>
    %c0_22 = arith.constant 0 : index
    %c2 = arith.constant 2 : index
    %c0_23 = arith.constant 0 : index
    %c0_24 = arith.constant 0 : index
    %63 = vector.load %arg7[%c0_22, %c2, %c0_23, %c0_24] : memref<1x4x8x8xbf16, #tpu.memory_space<vmem>>, vector<1x1x8x8xbf16>
    %64 = vector.shape_cast %63 : vector<1x1x8x8xbf16> to vector<8x8xbf16>
    %65 = arith.extf %64 : vector<8x8xbf16> to vector<8x8xf32>
    %66 = vector.shape_cast %65 : vector<8x8xf32> to vector<1x8x8xf32>
    %67 = arith.addf %62, %66 : vector<1x8x8xf32>
    %cst_25 = arith.constant dense<0xFF800000> : vector<1x8xf32>
    %68 = vector.multi_reduction <maximumf>, %67, %cst_25 [2] : vector<1x8x8xf32> to vector<1x8xf32>
    %69 = vector.shape_cast %68 : vector<1x8xf32> to vector<1x8x1xf32>
    %70 = vector.broadcast %69 : vector<1x8x1xf32> to vector<1x8x8xf32>
    %71 = arith.subf %67, %70 : vector<1x8x8xf32>
    %72 = math.exp %71 : vector<1x8x8xf32>
    %cst_26 = arith.constant dense<0.000000e+00> : vector<1x8xf32>
    %73 = vector.multi_reduction <add>, %72, %cst_26 [2] : vector<1x8x8xf32> to vector<1x8xf32>
    %74 = vector.shape_cast %73 : vector<1x8xf32> to vector<1x8x1xf32>
    %75 = arith.truncf %72 : vector<1x8x8xf32> to vector<1x8x8xbf16>
    %cst_27 = arith.constant dense<0.000000e+00> : vector<1x8x8xf32>
    %76 = tpu.matmul %75, %61, %cst_27 {dimension_numbers = #tpu.dot_dimension_numbers<[2], [1], [1], [2], [0, 0, 0, 1, 1, 2], [0], [0]>} : vector<1x8x8xbf16>, vector<1x8x8xbf16>, vector<1x8x8xf32> -> vector<1x8x8xf32>
    %77 = tpu.reciprocal %74 {approx = true} : vector<1x8x1xf32> -> vector<1x8x1xf32>
    %78 = vector.broadcast %77 : vector<1x8x1xf32> to vector<1x8x8xf32>
    %79 = arith.mulf %76, %78 : vector<1x8x8xf32>
    %80 = arith.truncf %79 : vector<1x8x8xf32> to vector<1x8x8xbf16>
    %81 = vector.extract_strided_slice %12 {offsets = [0, 0, 24], sizes = [1, 8, 8], strides = [1, 1, 1]} : vector<1x8x32xbf16> to vector<1x8x8xbf16>
    %82 = vector.extract_strided_slice %13 {offsets = [0, 0, 24], sizes = [1, 8, 8], strides = [1, 1, 1]} : vector<1x8x32xbf16> to vector<1x8x8xbf16>
    %83 = vector.extract_strided_slice %14 {offsets = [0, 0, 24], sizes = [1, 8, 8], strides = [1, 1, 1]} : vector<1x8x32xbf16> to vector<1x8x8xbf16>
    %cst_28 = arith.constant dense<0.000000e+00> : vector<1x8x8xf32>
    %84 = tpu.matmul %81, %82, %cst_28 {dimension_numbers = #tpu.dot_dimension_numbers<[2], [2], [1], [1], [0, 0, 0, 1, 1, 1], [0], [0]>} : vector<1x8x8xbf16>, vector<1x8x8xbf16>, vector<1x8x8xf32> -> vector<1x8x8xf32>
    %c0_29 = arith.constant 0 : index
    %c3 = arith.constant 3 : index
    %c0_30 = arith.constant 0 : index
    %c0_31 = arith.constant 0 : index
    %85 = vector.load %arg7[%c0_29, %c3, %c0_30, %c0_31] : memref<1x4x8x8xbf16, #tpu.memory_space<vmem>>, vector<1x1x8x8xbf16>
    %86 = vector.shape_cast %85 : vector<1x1x8x8xbf16> to vector<8x8xbf16>
    %87 = arith.extf %86 : vector<8x8xbf16> to vector<8x8xf32>
    %88 = vector.shape_cast %87 : vector<8x8xf32> to vector<1x8x8xf32>
    %89 = arith.addf %84, %88 : vector<1x8x8xf32>
    %cst_32 = arith.constant dense<0xFF800000> : vector<1x8xf32>
    %90 = vector.multi_reduction <maximumf>, %89, %cst_32 [2] : vector<1x8x8xf32> to vector<1x8xf32>
    %91 = vector.shape_cast %90 : vector<1x8xf32> to vector<1x8x1xf32>
    %92 = vector.broadcast %91 : vector<1x8x1xf32> to vector<1x8x8xf32>
    %93 = arith.subf %89, %92 : vector<1x8x8xf32>
    %94 = math.exp %93 : vector<1x8x8xf32>
    %cst_33 = arith.constant dense<0.000000e+00> : vector<1x8xf32>
    %95 = vector.multi_reduction <add>, %94, %cst_33 [2] : vector<1x8x8xf32> to vector<1x8xf32>
    %96 = vector.shape_cast %95 : vector<1x8xf32> to vector<1x8x1xf32>
    %97 = arith.truncf %94 : vector<1x8x8xf32> to vector<1x8x8xbf16>
    %cst_34 = arith.constant dense<0.000000e+00> : vector<1x8x8xf32>
    %98 = tpu.matmul %97, %83, %cst_34 {dimension_numbers = #tpu.dot_dimension_numbers<[2], [1], [1], [2], [0, 0, 0, 1, 1, 2], [0], [0]>} : vector<1x8x8xbf16>, vector<1x8x8xbf16>, vector<1x8x8xf32> -> vector<1x8x8xf32>
    %99 = tpu.reciprocal %96 {approx = true} : vector<1x8x1xf32> -> vector<1x8x1xf32>
    %100 = vector.broadcast %99 : vector<1x8x1xf32> to vector<1x8x8xf32>
    %101 = arith.mulf %98, %100 : vector<1x8x8xf32>
    %102 = arith.truncf %101 : vector<1x8x8xf32> to vector<1x8x8xbf16>
    %103 = tpu.concatenate %36, %58, %80, %102 in 2 : vector<1x8x8xbf16>, vector<1x8x8xbf16>, vector<1x8x8xbf16>, vector<1x8x8xbf16> -> vector<1x8x32xbf16>
    %104 = arith.index_cast %arg1 : i32 to index
    %c0_35 = arith.constant 0 : index
    %c0_36 = arith.constant 0 : index
    %c0_37 = arith.constant 0 : index
    %105 = vector.load %arg9[%104, %c0_35, %c0_36, %c0_37] : memref<1x1x8x32xbf16, #tpu.memory_space<vmem>>, vector<1x1x8x32xbf16>
    %106 = vector.shape_cast %105 : vector<1x1x8x32xbf16> to vector<1x8x32xbf16>
    %107 = vector.shape_cast %103 : vector<1x8x32xbf16> to vector<1x1x8x32xbf16>
    tpu.vector_store %arg9[%104, %c0_35, %c0_36, %c0_37], %107 {strides = array<i32>} : memref<1x1x8x32xbf16, #tpu.memory_space<vmem>>, vector<1x1x8x32xbf16>,
    %c0_i32 = arith.constant 0 : i32
    %108 = arith.cmpi eq, %arg1, %c0_i32 : i32
    %109 = arith.extui %108 : i1 to i32
    %c0_i32_38 = arith.constant 0 : i32
    %110 = arith.cmpi ne, %109, %c0_i32_38 : i32
    scf.if %110 {
      %c0_39 = arith.constant 0 : index
      %c0_40 = arith.constant 0 : index
      %c0_41 = arith.constant 0 : index
      %c0_42 = arith.constant 0 : index
      %111 = vector.load %arg9[%c0_39, %c0_40, %c0_41, %c0_42] : memref<1x1x8x32xbf16, #tpu.memory_space<vmem>>, vector<1x1x8x32xbf16>
      %112 = vector.shape_cast %111 : vector<1x1x8x32xbf16> to vector<1x8x32xbf16>
      %c0_43 = arith.constant 0 : index
      %c0_44 = arith.constant 0 : index
      %c0_45 = arith.constant 0 : index
      %113 = vector.load %arg5[%c0_43, %c0_44, %c0_45] : memref<1x32x32xbf16, #tpu.memory_space<vmem>>, vector<1x32x32xbf16>
      %114 = vector.shape_cast %113 : vector<1x32x32xbf16> to vector<32x32xbf16>
      %cst_46 = arith.constant dense<0.000000e+00> : vector<1x8x32xf32>
      %115 = tpu.matmul %112, %114, %cst_46 {dimension_numbers = #tpu.dot_dimension_numbers<[2], [0], [0, 1], [1], [0, 0, 0, 1, 1, 1], [], []>} : vector<1x8x32xbf16>, vector<32x32xbf16>, vector<1x8x32xf32> -> vector<1x8x32xf32>
      %c0_47 = arith.constant 0 : index
      %c0_48 = arith.constant 0 : index
      %116 = vector.load %arg6[%c0_47, %c0_48] : memref<1x32xf32, #tpu.memory_space<vmem>>, vector<1x32xf32>
      %117 = vector.shape_cast %116 : vector<1x32xf32> to vector<1x1x32xf32>
      %118 = vector.broadcast %117 : vector<1x1x32xf32> to vector<1x8x32xf32>
      %119 = arith.addf %115, %118 : vector<1x8x32xf32>
      %c0_49 = arith.constant 0 : index
      %c0_50 = arith.constant 0 : index
      %c0_51 = arith.constant 0 : index
      %120 = vector.load %arg8[%c0_49, %c0_50, %c0_51] : memref<1x8x32xf32, #tpu.memory_space<vmem>>, vector<1x8x32xf32>
      tpu.vector_store %arg8[%c0_49, %c0_50, %c0_51], %119 {strides = array<i32>} : memref<1x8x32xf32, #tpu.memory_space<vmem>>, vector<1x8x32xf32>,
    } else {
    }
    return
  }
  func.func @transform_0(%arg0: i32, %arg1: i32) -> (i32, i32, i32) {
    %c0_i32 = arith.constant 0 : i32
    %c0_i32_0 = arith.constant 0 : i32
    %c0_i32_1 = arith.constant 0 : i32
    return %arg0, %c0_i32, %c0_i32_0 : i32, i32, i32
  }
  func.func @transform_1(%arg0: i32, %arg1: i32) -> (i32, i32, i32) {
    %c0_i32 = arith.constant 0 : i32
    %c0_i32_0 = arith.constant 0 : i32
    %c0_i32_1 = arith.constant 0 : i32
    %c0_i32_2 = arith.constant 0 : i32
    return %c0_i32, %c0_i32_0, %c0_i32_1 : i32, i32, i32
  }
  func.func @transform_2(%arg0: i32, %arg1: i32) -> (i32, i32, i32) {
    %c0_i32 = arith.constant 0 : i32
    %c0_i32_0 = arith.constant 0 : i32
    %c0_i32_1 = arith.constant 0 : i32
    %c0_i32_2 = arith.constant 0 : i32
    return %c0_i32, %c0_i32_0, %c0_i32_1 : i32, i32, i32
  }
  func.func @transform_3(%arg0: i32, %arg1: i32) -> (i32, i32, i32) {
    %c0_i32 = arith.constant 0 : i32
    %c0_i32_0 = arith.constant 0 : i32
    %c0_i32_1 = arith.constant 0 : i32
    %c0_i32_2 = arith.constant 0 : i32
    return %c0_i32, %c0_i32_0, %c0_i32_1 : i32, i32, i32
  }
  func.func @transform_4(%arg0: i32, %arg1: i32) -> (i32, i32) {
    %c0_i32 = arith.constant 0 : i32
    %c0_i32_0 = arith.constant 0 : i32
    %c0_i32_1 = arith.constant 0 : i32
    return %c0_i32, %c0_i32_0 : i32, i32
  }
  func.func @transform_5(%arg0: i32, %arg1: i32) -> (i32, i32, i32, i32) {
    %c0_i32 = arith.constant 0 : i32
    %c0_i32_0 = arith.constant 0 : i32
    %c0_i32_1 = arith.constant 0 : i32
    %c0_i32_2 = arith.constant 0 : i32
    return %arg1, %c0_i32, %c0_i32_0, %c0_i32_1 : i32, i32, i32, i32
  }
  func.func @transform_6(%arg0: i32, %arg1: i32) -> (i32, i32, i32) {
    %c0_i32 = arith.constant 0 : i32
    %c0_i32_0 = arith.constant 0 : i32
    %c0_i32_1 = arith.constant 0 : i32
    return %arg0, %c0_i32, %c0_i32_0 : i32, i32, i32
  }
}

</mosaic_0001>

<llo_original>
// kernel: tpu_custom_call.1
$region0: #{tpu_custom_call.1}
  #allocation0 [shape = 'u32[]', space=smem, size = 0x4, offset = 0x4, fixed_abs, tag = 'smem constant byte address 0x4 - core index']
  #allocation1 [shape = 'u32[144,128]{1,0:T(1,128)}', space=vmem, size = 0x12000, scoped, tag = 'internal scratch']
  #allocation2 [shape = 'bf16[1,1,8,32]{3,2,1,0:T(8,128)(2,1)}', space=vmem, size = 0x800, scoped, tag = 'scratch operand']
  %s0 = inlined_call_operand.hbm [shape: bf16[2,8,32], index: 0, kind: input, shape index: {}]
  %s1 = inlined_call_operand.hbm [shape: bf16[1,32,96], index: 1, kind: input, shape index: {}]
  %s2 = inlined_call_operand.vmem [shape: f32[1,1,96], index: 2, kind: input, shape index: {}]
  %s3 = inlined_call_operand.hbm [shape: bf16[1,32,32], index: 3, kind: input, shape index: {}]
  %s4 = inlined_call_operand.vmem [shape: f32[1,32], index: 4, kind: input, shape index: {}]
  %s5 = inlined_call_operand.vmem [shape: bf16[1,4,8,8], index: 5, kind: input, shape index: {}]
  %s6 = inlined_call_operand.hbm [shape: f32[2,8,32], index: 6, kind: output, shape index: {}]
  %s7 = sld [smem:[#allocation0]]
  $region73: #{tpu_custom_call.1} parent=0
    _
  %s9 = ssub.s32 1, %s7
  %s10 = scalar_select 0, %s9, %s7
  $region1: #{tpu_custom_call.1} parent=0
    #allocation3 [shape = 'u8[4096]{0}', space=vmem, size = 0x1000, scoped, tag = 'input window, operand 0']
    #allocation4 [shape = 's32[2]{0}', space=sflag, size = 0x8, scoped, tag = 'scoped memory for tpu_custom_call.1']
    #allocation5 [shape = 's32[2]{0}', space=sflag, size = 0x8, scoped, tag = 'scoped memory for tpu_custom_call.1']
    #allocation6 [shape = 'u8[8192]{0}', space=vmem, size = 0x2000, scoped, tag = 'input window, operand 1, single buffered']
    #allocation7 [shape = 's32[1]{0}', space=sflag, size = 0x4, scoped, tag = 'scoped memory for tpu_custom_call.1']
    #allocation8 [shape = 'u8[8192]{0}', space=vmem, size = 0x2000, scoped, tag = 'input window, operand 3, single buffered']
    #allocation9 [shape = 'u8[8192]{0}', space=vmem, size = 0x2000, scoped, tag = 'output window, operand 0']
    %11 = vsyncpa [#allocation4], 0
    %s12 = scalar_lea.sflag [#allocation4], 1
    %13 = vsyncpa %s12, 0
    %14 = vsyncpa [#allocation7], 0
    %15 = vsyncpa [#allocation5], 0
    %s16 = scalar_lea.sflag [#allocation5], 1
    %17 = vsyncpa %s16, 0
    loop: start=0, step=1, limit=4
    $region2: #{tpu_custom_call.1} parent=1 // loop_pre_header
      _
    $region3: #{tpu_custom_call.1} parent=1 // loop_header
      %s19 = sphi 0, %s23
      %p20 = scmp.ge.s32.totalorder %s19, 4
      %s26 = sphi 0, %s38
      %s27 = sphi 0, %s34
      %s28 = sphi 0, %s26
      %s29 = sphi 0, %s27
      %s30 = sphi 0, %s28
      %s31 = sphi 0, %s29
      %s41 = sphi 0, %s43
      %s44 = sphi 0, %s41
      %s45 = sphi 0, %s44
      %s61 = sphi 0, %s45
      %s65 = sphi 0, %s65
      %s67 = sphi 0, %s65
      %s68 = sphi 0, %s67
      %s82 = sphi 0, %s68
      %s86 = sphi 0, %s86
      %s88 = sphi 0, %s86
      %s89 = sphi 0, %s88
      %s103 = sphi 0, %s89
      %s107 = sphi 0, %s107
      %s109 = sphi 0, %s107
      %s110 = sphi 0, %s109
      %s124 = sphi 0, %s110
      %s128 = sphi 0, %s128
      %s130 = sphi 0, %s128
      %s131 = sphi 0, %s130
      %s145 = sphi 0, %s131
      %s151 = sphi 0, %s153
      %s154 = sphi 0, %s151
      %s155 = sphi 0, %s154
      %s171 = sphi 0, %s155
      %s177 = sphi 0, %s179
      %s180 = sphi 0, %s177
      %s181 = sphi 0, %s180
      %s197 = sphi 0, %s181
    $region4: #{tpu_custom_call.1} parent=1 // loop_header_branch
      %22 = sbr.rel (%p20) target = $region8
    $region5: #{tpu_custom_call.1} parent=1 // loop_body
      %s24 = ssub.s32 %s19, 1
      %s25 = ssub.s32 %s19, 2
      %s32 = sadd.s32 1, %s27
      %p33 = scmp.ge.s32.totalorder %s32, 1
      %s34 = scalar_select %p33, 0, %s32
      %s35 = sadd.s32 1, %s26
      %s36 = scalar_select %p33, %s35, %s26
      %p37 = scmp.ge.s32.totalorder %s36, 2
      %s38 = scalar_select %p37, 0, %s36
      %s39 = ssub.s32 %s26, %s38
      %p40 = scmp.eq.s32.totalorder %s39, 0
      %s42 = sadd.s32 %s41, 1
      %s43 = scalar_select %p40, %s41, %s42
      %p46 = pneg %p40
      %p47 = scmp.eq.s32.totalorder %s19, 1
      %p48 = por %p46, %p47
      %p49 = scmp.ne.s32.totalorder %s41, %s44
      %p50 = scmp.eq.s32.totalorder %s19, 0
      %p51 = por %p49, %p50
      %p52 = scmp.ne.s32.totalorder %s41, %s44
      %p53 = scmp.eq.s32.totalorder %s24, 1
      %p54 = por %p52, %p53
      %p55 = scmp.ne.s32.totalorder %s44, %s45
      %p56 = scmp.eq.s32.totalorder %s24, 0
      %p57 = por %p55, %p56
      %p58 = scmp.ne.s32.totalorder %s44, %s45
      %p59 = scmp.eq.s32.totalorder %s25, 1
      %p60 = por %p58, %p59
      %p62 = scmp.ne.s32.totalorder %s45, %s61
      %p63 = scmp.eq.s32.totalorder %s25, 0
      %p64 = por %p62, %p63
      %s66 = sadd.s32 %s65, 1
      %p69 = scmp.eq.s32.totalorder %s19, 1
      %p70 = scmp.ne.s32.totalorder %s65, %s67
      %p71 = scmp.eq.s32.totalorder %s19, 0
      %p72 = por %p70, %p71
      %p73 = scmp.ne.s32.totalorder %s65, %s67
      %p74 = scmp.eq.s32.totalorder %s24, 1
      %p75 = por %p73, %p74
      %p76 = scmp.ne.s32.totalorder %s67, %s68
      %p77 = scmp.eq.s32.totalorder %s24, 0
      %p78 = por %p76, %p77
      %p79 = scmp.ne.s32.totalorder %s67, %s68
      %p80 = scmp.eq.s32.totalorder %s25, 1
      %p81 = por %p79, %p80
      %p83 = scmp.ne.s32.totalorder %s68, %s82
      %p84 = scmp.eq.s32.totalorder %s25, 0
      %p85 = por %p83, %p84
      %s87 = sadd.s32 %s86, 1
      %p90 = scmp.eq.s32.totalorder %s19, 1
      %p91 = scmp.ne.s32.totalorder %s86, %s88
      %p92 = scmp.eq.s32.totalorder %s19, 0
      %p93 = por %p91, %p92
      %p94 = scmp.ne.s32.totalorder %s86, %s88
      %p95 = scmp.eq.s32.totalorder %s24, 1
      %p96 = por %p94, %p95
      %p97 = scmp.ne.s32.totalorder %s88, %s89
      %p98 = scmp.eq.s32.totalorder %s24, 0
      %p99 = por %p97, %p98
      %p100 = scmp.ne.s32.totalorder %s88, %s89
      %p101 = scmp.eq.s32.totalorder %s25, 1
      %p102 = por %p100, %p101
      %p104 = scmp.ne.s32.totalorder %s89, %s103
      %p105 = scmp.eq.s32.totalorder %s25, 0
      %p106 = por %p104, %p105
      %s108 = sadd.s32 %s107, 1
      %p111 = scmp.eq.s32.totalorder %s19, 1
      %p112 = scmp.ne.s32.totalorder %s107, %s109
      %p113 = scmp.eq.s32.totalorder %s19, 0
      %p114 = por %p112, %p113
      %p115 = scmp.ne.s32.totalorder %s107, %s109
      %p116 = scmp.eq.s32.totalorder %s24, 1
      %p117 = por %p115, %p116
      %p118 = scmp.ne.s32.totalorder %s109, %s110
      %p119 = scmp.eq.s32.totalorder %s24, 0
      %p120 = por %p118, %p119
      %p121 = scmp.ne.s32.totalorder %s109, %s110
      %p122 = scmp.eq.s32.totalorder %s25, 1
      %p123 = por %p121, %p122
      %p125 = scmp.ne.s32.totalorder %s110, %s124
      %p126 = scmp.eq.s32.totalorder %s25, 0
      %p127 = por %p125, %p126
      %s129 = sadd.s32 %s128, 1
      %p132 = scmp.eq.s32.totalorder %s19, 1
      %p133 = scmp.ne.s32.totalorder %s128, %s130
      %p134 = scmp.eq.s32.totalorder %s19, 0
      %p135 = por %p133, %p134
      %p136 = scmp.ne.s32.totalorder %s128, %s130
      %p137 = scmp.eq.s32.totalorder %s24, 1
      %p138 = por %p136, %p137
      %p139 = scmp.ne.s32.totalorder %s130, %s131
      %p140 = scmp.eq.s32.totalorder %s24, 0
      %p141 = por %p139, %p140
      %p142 = scmp.ne.s32.totalorder %s130, %s131
      %p143 = scmp.eq.s32.totalorder %s25, 1
      %p144 = por %p142, %p143
      %p146 = scmp.ne.s32.totalorder %s131, %s145
      %p147 = scmp.eq.s32.totalorder %s25, 0
      %p148 = por %p146, %p147
      %s149 = ssub.s32 %s27, %s34
      %p150 = scmp.eq.s32.totalorder %s149, 0
      %s152 = sadd.s32 %s151, 1
      %s153 = scalar_select %p150, %s151, %s152
      %p156 = pneg %p150
      %p157 = scmp.eq.s32.totalorder %s19, 1
      %p158 = por %p156, %p157
      %p159 = scmp.ne.s32.totalorder %s151, %s154
      %p160 = scmp.eq.s32.totalorder %s19, 0
      %p161 = por %p159, %p160
      %p162 = scmp.ne.s32.totalorder %s151, %s154
      %p163 = scmp.eq.s32.totalorder %s24, 1
      %p164 = por %p162, %p163
      %p165 = scmp.ne.s32.totalorder %s154, %s155
      %p166 = scmp.eq.s32.totalorder %s24, 0
      %p167 = por %p165, %p166
      %p168 = scmp.ne.s32.totalorder %s154, %s155
      %p169 = scmp.eq.s32.totalorder %s25, 1
      %p170 = por %p168, %p169
      %p172 = scmp.ne.s32.totalorder %s155, %s171
      %p173 = scmp.eq.s32.totalorder %s25, 0
      %p174 = por %p172, %p173
      %s175 = ssub.s32 %s26, %s38
      %p176 = scmp.eq.s32.totalorder %s175, 0
      %s178 = sadd.s32 %s177, 1
      %s179 = scalar_select %p176, %s177, %s178
      %p182 = pneg %p176
      %p183 = scmp.eq.s32.totalorder %s19, 1
      %p184 = por %p182, %p183
      %p185 = scmp.ne.s32.totalorder %s177, %s180
      %p186 = scmp.eq.s32.totalorder %s19, 0
      %p187 = por %p185, %p186
      %p188 = scmp.ne.s32.totalorder %s177, %s180
      %p189 = scmp.eq.s32.totalorder %s24, 1
      %p190 = por %p188, %p189
      %p191 = scmp.ne.s32.totalorder %s180, %s181
      %p192 = scmp.eq.s32.totalorder %s24, 0
      %p193 = por %p191, %p192
      %p194 = scmp.ne.s32.totalorder %s180, %s181
      %p195 = scmp.eq.s32.totalorder %s25, 1
      %p196 = por %p194, %p195
      %p198 = scmp.ne.s32.totalorder %s181, %s197
      %p199 = scmp.eq.s32.totalorder %s25, 0
      %p200 = por %p198, %p199
      %p201 = scmp.le.s32.totalorder 1, %s19
      %p202 = scmp.lt.s32.totalorder %s19, 3
      %p203 = pnand %p201, %p202
      %p204 = pneg %p203
      // Predicated region
      $region9: #{tpu_custom_call.1} parent=5 // pred_check
        _
      $region10: #{tpu_custom_call.1} parent=5 // pred_check_branch
        %206 = sbr.rel (%p203) target = $region12
      $region11: #{tpu_custom_call.1} parent=5 // pred_region
        %s207 = ssub.s32 %s19, 1
        // Predicated region
        $region13: #{tpu_custom_call.1} parent=11 // pred_check
          %p208 = pneg %p78
        $region14: #{tpu_custom_call.1} parent=11 // pred_check_branch
          %210 = sbr.rel (%p208) target = $region16
        $region15: #{tpu_custom_call.1} parent=11 // pred_region
          %s212 = ssub.s32 256, 256
          %213 = vsyncadd [#allocation7], %s212
          %s214 = sshll.u32 [#allocation6], 4
          %s215 = int_to_ptr.vmem [resolvable:$true] %s214
          %220 = dma.hbm_to_vmem [thread:$0]  %s1, 256, %s215, [#allocation7], 64, 64, 4
        $region16: #{tpu_custom_call.1} parent=11 // pred_fallthru
          _
        // Predicated region
        $region17: #{tpu_custom_call.1} parent=11 // pred_check
          %p221 = pneg %p99
        $region18: #{tpu_custom_call.1} parent=11 // pred_check_branch
          %223 = sbr.rel (%p221) target = $region20
        $region19: #{tpu_custom_call.1} parent=11 // pred_region
          _
        $region20: #{tpu_custom_call.1} parent=11 // pred_fallthru
          _
        // Predicated region
        $region21: #{tpu_custom_call.1} parent=11 // pred_check
          %p224 = pneg %p120
        $region22: #{tpu_custom_call.1} parent=11 // pred_check_branch
          %226 = sbr.rel (%p224) target = $region24
        $region23: #{tpu_custom_call.1} parent=11 // pred_region
          %s228 = ssub.s32 256, 256
          %229 = vsyncadd [#allocation7], %s228
          %s230 = sshll.u32 [#allocation8], 4
          %s231 = int_to_ptr.vmem [resolvable:$true] %s230
          %236 = dma.hbm_to_vmem [thread:$0]  %s3, 256, %s231, [#allocation7], 64, 64, 4
        $region24: #{tpu_custom_call.1} parent=11 // pred_fallthru
          _
        // Predicated region
        $region25: #{tpu_custom_call.1} parent=11 // pred_check
          %p237 = pneg %p141
        $region26: #{tpu_custom_call.1} parent=11 // pred_check_branch
          %239 = sbr.rel (%p237) target = $region28
        $region27: #{tpu_custom_call.1} parent=11 // pred_region
          _
        $region28: #{tpu_custom_call.1} parent=11 // pred_fallthru
          _
        // Predicated region
        $region29: #{tpu_custom_call.1} parent=11 // pred_check
          %p240 = pneg %p167
        $region30: #{tpu_custom_call.1} parent=11 // pred_check_branch
          %242 = sbr.rel (%p240) target = $region32
        $region31: #{tpu_custom_call.1} parent=11 // pred_region
          %p243 = scmp.lt.s32.totalorder %s29, 0
          %s244 = scalar_select %p243, %s29, 0
          %s245 = smul.addr %s244, 4
          %s246 = smul.addr %s245, 4
          %s247 = scalar_lea.vmem %s5, %s246
        $region32: #{tpu_custom_call.1} parent=11 // pred_fallthru
          _
      $region12: #{tpu_custom_call.1} parent=5 // pred_fallthru
        _
      %p248 = scmp.lt.s32.totalorder %s19, 2
      // Predicated region
      $region33: #{tpu_custom_call.1} parent=5 // pred_check
        %p249 = pneg %p248
      $region34: #{tpu_custom_call.1} parent=5 // pred_check_branch
        %251 = sbr.rel (%p249) target = $region36
      $region35: #{tpu_custom_call.1} parent=5 // pred_region
        // Predicated region
        $region37: #{tpu_custom_call.1} parent=35 // pred_check
          %p252 = pneg %p51
        $region38: #{tpu_custom_call.1} parent=35 // pred_check_branch
          %254 = sbr.rel (%p252) target = $region40
        $region39: #{tpu_custom_call.1} parent=35 // pred_region
          %s255 = sand.u32 %s41, 1
          %s256 = scalar_lea.sflag [#allocation4], %s255
          %s257 = sand.u32 %s41, 1
          %s258 = smul.addr %s257, 4
          %s259 = scalar_lea.vmem [#allocation3], %s258
          %s261 = ssub.s32 64, 64
          %262 = vsyncadd %s256, %s261
          %s263 = smul.addr %s26, 64
          %s264 = scalar_lea.hbm %s0, %s263
          %s266 = sshll.u32 %s259, 4
          %s267 = int_to_ptr.vmem [resolvable:$true] %s266
          %269 = dma.hbm_to_vmem [thread:$0]  %s264, 64, %s267, %s256
        $region40: #{tpu_custom_call.1} parent=35 // pred_fallthru
          _
      $region36: #{tpu_custom_call.1} parent=5 // pred_fallthru
        _
      %p270 = scmp.le.s32.totalorder 1, %s19
      %p271 = scmp.lt.s32.totalorder %s19, 3
      %p272 = pnand %p270, %p271
      %p273 = pneg %p272
      // Predicated region
      $region41: #{tpu_custom_call.1} parent=5 // pred_check
        _
      $region42: #{tpu_custom_call.1} parent=5 // pred_check_branch
        %275 = sbr.rel (%p272) target = $region44
      $region43: #{tpu_custom_call.1} parent=5 // pred_region
        %s276 = ssub.s32 %s19, 1
        %s277 = sand.u32 %s44, 1
        %s278 = scalar_lea.sflag [#allocation4], %s277
        %s279 = sand.u32 %s44, 1
        %s280 = smul.addr %s279, 4
        %s281 = scalar_lea.vmem [#allocation3], %s280
        // Predicated region
        $region45: #{tpu_custom_call.1} parent=43 // pred_check
          %p282 = pneg %p57
        $region46: #{tpu_custom_call.1} parent=43 // pred_check_branch
          %284 = sbr.rel (%p282) target = $region48
        $region47: #{tpu_custom_call.1} parent=43 // pred_region
          %285 = dma.done %s278, 64
        $region48: #{tpu_custom_call.1} parent=43 // pred_fallthru
          _
        // Predicated region
        $region49: #{tpu_custom_call.1} parent=43 // pred_check
          %p286 = pneg %p78
        $region50: #{tpu_custom_call.1} parent=43 // pred_check_branch
          %288 = sbr.rel (%p286) target = $region52
        $region51: #{tpu_custom_call.1} parent=43 // pred_region
          %289 = dma.done [#allocation7], 256
        $region52: #{tpu_custom_call.1} parent=43 // pred_fallthru
          _
        // Predicated region
        $region53: #{tpu_custom_call.1} parent=43 // pred_check
          %p290 = pneg %p120
        $region54: #{tpu_custom_call.1} parent=43 // pred_check_branch
          %292 = sbr.rel (%p290) target = $region56
        $region55: #{tpu_custom_call.1} parent=43 // pred_region
          %293 = dma.done [#allocation7], 256
        $region56: #{tpu_custom_call.1} parent=43 // pred_fallthru
          _
        %s294 = sand.u32 %s44, 1
        %s295 = scalar_lea.sflag [#allocation4], %s294
        %s296 = sand.u32 %s44, 1
        %s297 = smul.addr %s296, 4
        %s298 = scalar_lea.vmem [#allocation3], %s297
        %p299 = pneg %p57
        %p300 = pneg %p54
        %p301 = pneg %p78
        %p302 = pneg %p75
        %p303 = pneg %p99
        %p304 = pneg %p96
        %p305 = pneg %p120
        %p306 = pneg %p117
        %p307 = pneg %p141
        %p308 = pneg %p138
        %p309 = scmp.lt.s32.totalorder %s29, 0
        %s310 = scalar_select %p309, %s29, 0
        %s311 = smul.addr %s310, 4
        %s312 = smul.addr %s311, 4
        %s313 = scalar_lea.vmem %s5, %s312
        %p314 = pneg %p167
        %p315 = pneg %p164
        %p316 = pneg %p193
        %p317 = pneg %p190
        %s318 = sand.u32 %s180, 1
        %s319 = scalar_lea.sflag [#allocation5], %s318
        %s320 = sand.u32 %s180, 1
        %s321 = smul.addr %s320, 8
        %s322 = scalar_lea.vmem [#allocation9], %s321
        %p323 = scmp.lt.s32.totalorder %s29, 0
        %s324 = scalar_select %p323, %s29, 0
        %s325 = smul.addr %s324, 4
        %s326 = smul.addr %s325, 4
        %s327 = scalar_lea.vmem %s5, %s326
        %v329 = vld [vmem:[%s281] sm:$0xf]
        %s330 = smul.u32 %s29, 4
        %s331 = smul.addr %s330, 4
        %s332 = scalar_lea.vmem [#allocation6], %s331
        %v333 = vld [vmem:[%s332] sm:$0xf]
        %v334 = vld [vmem:[%s332 + $0x4] sm:$0xf]
        %v335 = vld [vmem:[%s332 + $0x8] sm:$0xf]
        %v336 = vld [vmem:[%s332 + $0xc] sm:$0xf]
        %s337 = scalar_lea.vmem %s2, %s29
        %v338 = vld [vmem:[%s337] sm:$0x1]
        %v340 = vlaneseq
        %v341 = vshrl.u32 %v340, 7
        %v342 = vsub.s32 0, %v341
        %v343 = vrot.slane %v338, %v342
        %v349 = vunpack.c.l.b16 %v333
        %v350 = vunpack.c.l.b16 %v334
        %v351 = vunpack.c.l.b16 %v335
        %v352 = vunpack.c.l.b16 %v336
        %v353 = vpack.c.b16 %v350, %v349
        %v354 = vpack.c.b16 %v352, %v351
        %vm357 = vcmask 261120
        %v359 = vsel %vm357, %v329, 0
        %361 = vmatprep.subr.bf16.mxu0 0
        %362 = vmatpush1.bf16.msra.mxu0 %v353
        %363 = vmatprep.subr.bf16.mxu0 0
        %364 = vmatpush1.bf16.msra.mxu0 %v354
        %365 = vmatprep.subr.bf16.mxu0 0
        %366 = vmatpush1.bf16.msra.mxu0 0
        %367 = vmatprep.subr.bf16.mxu0 0
        %368 = vmatpush1.bf16.msra.mxu0 0
        %369 = vmatprep.subr.bf16.mxu0 0
        %370 = vmatpush1.bf16.msra.mxu0 0
        %371 = vmatprep.subr.bf16.mxu0 0
        %372 = vmatpush1.bf16.msra.mxu0 0
        %373 = vmatprep.subr.bf16.mxu0 0
        %374 = vmatpush1.bf16.msra.mxu0 0
        %375 = vmatprep.subr.bf16.mxu0 0
        %376 = vmatpush1.bf16.msra.mxu0 0
        %377 = vmatprep.subr.bf16.mxu0 0
        %378 = vmatpush1.bf16.msra.mxu0 0
        %379 = vmatprep.subr.bf16.mxu0 0
        %380 = vmatpush1.bf16.msra.mxu0 0
        %381 = vmatprep.subr.bf16.mxu0 0
        %382 = vmatpush1.bf16.msra.mxu0 0
        %383 = vmatprep.subr.bf16.mxu0 0
        %384 = vmatpush1.bf16.msra.mxu0 0
        %385 = vmatprep.subr.bf16.mxu0 0
        %386 = vmatpush1.bf16.msra.mxu0 0
        %387 = vmatprep.subr.bf16.mxu0 0
        %388 = vmatpush1.bf16.msra.mxu0 0
        %389 = vmatprep.subr.bf16.mxu0 0
        %390 = vmatpush1.bf16.msra.mxu0 0
        %391 = vmatprep.subr.bf16.mxu0 0
        %392 = vmatpush1.bf16.msra.mxu0 0
        %393 = vmatprep.mubr.bf16.mxu0 0
        %394 = vmatmul.mubr.bf16.gmra.mrb[0].mxu0 %v359
        %v395 = vpop.f32.mrb[0].mxu0
        %v396 = vadd.f32 %v343, %v395
        %v397 = vpop.f32.mrb[0].mxu0
        %v398 = vpop.f32.mrb[0].mxu0
        %v399 = vpop.f32.mrb[0].mxu0
        %400 = vdwg.mxu0
        %v401 = vpack.c.bf16 %v396, %v396
        %v402 = vld [vmem:[%s327] sm:$0xf]
        %v403 = vunpack.c.l.bf16 %v402
        %405 = vrot.lane.b32.xlu0 %v401, 96
        %v406 = vpop.permute.xlu0 %405
        %vm407 = vcmask 64512
        %v409 = vsel %vm407, %v401, 0
        %v412 = vsel %vm407, %v406, 0
        %414 = vmatprep.subr.bf16.mxu0 0
        %415 = vmatpush1.bf16.xpose.msra.mxu0 %v412
        %416 = vmatprep.subr.bf16.mxu0 0
        %417 = vmatpush1.bf16.xpose.msra.mxu0 0
        %418 = vmatprep.subr.bf16.mxu0 0
        %419 = vmatpush1.bf16.xpose.msra.mxu0 0
        %420 = vmatprep.subr.bf16.mxu0 0
        %421 = vmatpush1.bf16.xpose.msra.mxu0 0
        %422 = vmatprep.subr.bf16.mxu0 0
        %423 = vmatpush1.bf16.xpose.msra.mxu0 0
        %424 = vmatprep.subr.bf16.mxu0 0
        %425 = vmatpush1.bf16.xpose.msra.mxu0 0
        %426 = vmatprep.subr.bf16.mxu0 0
        %427 = vmatpush1.bf16.xpose.msra.mxu0 0
        %428 = vmatprep.subr.bf16.mxu0 0
        %429 = vmatpush1.bf16.xpose.msra.mxu0 0
        %430 = vmatprep.subr.bf16.mxu0 0
        %431 = vmatpush1.bf16.xpose.msra.mxu0 0
        %432 = vmatprep.subr.bf16.mxu0 0
        %433 = vmatpush1.bf16.xpose.msra.mxu0 0
        %434 = vmatprep.subr.bf16.mxu0 0
        %435 = vmatpush1.bf16.xpose.msra.mxu0 0
        %436 = vmatprep.subr.bf16.mxu0 0
        %437 = vmatpush1.bf16.xpose.msra.mxu0 0
        %438 = vmatprep.subr.bf16.mxu0 0
        %439 = vmatpush1.bf16.xpose.msra.mxu0 0
        %440 = vmatprep.subr.bf16.mxu0 0
        %441 = vmatpush1.bf16.xpose.msra.mxu0 0
        %442 = vmatprep.subr.bf16.mxu0 0
        %443 = vmatpush1.bf16.xpose.msra.mxu0 0
        %444 = vmatprep.subr.bf16.mxu0 0
        %445 = vmatpush1.bf16.xpose.msra.mxu0 0
        %446 = vmatprep.mubr.bf16.mxu0 0
        %447 = vmatmul.mubr.bf16.gmra.mrb[0].mxu0 %v409
        %v448 = vpop.f32.mrb[0].mxu0
        %v449 = vadd.f32 %v403, %v448
        %v450 = vpop.f32.mrb[0].mxu0
        %v451 = vpop.f32.mrb[0].mxu0
        %v452 = vpop.f32.mrb[0].mxu0
        %453 = vdwg.mxu0
        %v454 = vsel %vm407, %v449, -inf
        %455 = vmax.xlane.f32.xlu0 %v454
        %v456 = vpop.xlane.xlu0 %455
        %v457 = vsub.f32 %v449, %v456
        %v458 = vmul.f32 %v457, 1.442695
        %v459 = vpow.pop %v458
        %v460 = vsel %vm407, %v459, 0.0
        %461 = vadd.xlane.f32.xlu0 %v460
        %v462 = vpop.xlane.xlu0 %461
        %v463 = vpack.c.bf16 %v459, %v459
        %464 = vrot.lane.b32.xlu0 %v401, 64
        %v465 = vpop.permute.xlu0 %464
        %v467 = vsel %vm407, %v463, 0
        %vm469 = vcmask 1043456
        %v471 = vsel %vm469, %v465, 0
        %473 = vmatprep.subr.bf16.mxu0 0
        %474 = vmatpush1.bf16.msra.mxu0 %v471
        %475 = vmatprep.subr.bf16.mxu0 0
        %476 = vmatpush1.bf16.msra.mxu0 0
        %477 = vmatprep.subr.bf16.mxu0 0
        %478 = vmatpush1.bf16.msra.mxu0 0
        %479 = vmatprep.subr.bf16.mxu0 0
        %480 = vmatpush1.bf16.msra.mxu0 0
        %481 = vmatprep.subr.bf16.mxu0 0
        %482 = vmatpush1.bf16.msra.mxu0 0
        %483 = vmatprep.subr.bf16.mxu0 0
        %484 = vmatpush1.bf16.msra.mxu0 0
        %485 = vmatprep.subr.bf16.mxu0 0
        %486 = vmatpush1.bf16.msra.mxu0 0
        %487 = vmatprep.subr.bf16.mxu0 0
        %488 = vmatpush1.bf16.msra.mxu0 0
        %489 = vmatprep.subr.bf16.mxu0 0
        %490 = vmatpush1.bf16.msra.mxu0 0
        %491 = vmatprep.subr.bf16.mxu0 0
        %492 = vmatpush1.bf16.msra.mxu0 0
        %493 = vmatprep.subr.bf16.mxu0 0
        %494 = vmatpush1.bf16.msra.mxu0 0
        %495 = vmatprep.subr.bf16.mxu0 0
        %496 = vmatpush1.bf16.msra.mxu0 0
        %497 = vmatprep.subr.bf16.mxu0 0
        %498 = vmatpush1.bf16.msra.mxu0 0
        %499 = vmatprep.subr.bf16.mxu0 0
        %500 = vmatpush1.bf16.msra.mxu0 0
        %501 = vmatprep.subr.bf16.mxu0 0
        %502 = vmatpush1.bf16.msra.mxu0 0
        %503 = vmatprep.subr.bf16.mxu0 0
        %504 = vmatpush1.bf16.msra.mxu0 0
        %505 = vmatprep.mubr.bf16.mxu0 0
        %506 = vmatmul.mubr.bf16.gmra.mrb[0].mxu0 %v467
        %v507 = vpop.f32.mrb[0].mxu0
        %v508 = vadd.f32 0.0, %v507
        %v509 = vpop.f32.mrb[0].mxu0
        %v510 = vpop.f32.mrb[0].mxu0
        %v511 = vpop.f32.mrb[0].mxu0
        %512 = vdwg.mxu0
        %v513 = vrcp.pop %v462
        %v514 = vmul.f32 %v508, %v513
        %v515 = vpack.c.bf16 %v514, %v514
        %s516 = scalar_lea.vmem %s327, 4
        %v517 = vld [vmem:[%s516] sm:$0xf]
        %v518 = vunpack.c.l.bf16 %v517
        %519 = vrot.lane.b32.xlu0 %v401, 120
        %v520 = vpop.permute.xlu0 %519
        %521 = vrot.lane.b32.xlu0 %v401, 88
        %v522 = vpop.permute.xlu0 %521
        %v524 = vsel %vm407, %v520, 0
        %v527 = vsel %vm407, %v522, 0
        %529 = vmatprep.subr.bf16.mxu0 0
        %530 = vmatpush1.bf16.xpose.msra.mxu0 %v527
        %531 = vmatprep.subr.bf16.mxu0 0
        %532 = vmatpush1.bf16.xpose.msra.mxu0 0
        %533 = vmatprep.subr.bf16.mxu0 0
        %534 = vmatpush1.bf16.xpose.msra.mxu0 0
        %535 = vmatprep.subr.bf16.mxu0 0
        %536 = vmatpush1.bf16.xpose.msra.mxu0 0
        %537 = vmatprep.subr.bf16.mxu0 0
        %538 = vmatpush1.bf16.xpose.msra.mxu0 0
        %539 = vmatprep.subr.bf16.mxu0 0
        %540 = vmatpush1.bf16.xpose.msra.mxu0 0
        %541 = vmatprep.subr.bf16.mxu0 0
        %542 = vmatpush1.bf16.xpose.msra.mxu0 0
        %543 = vmatprep.subr.bf16.mxu0 0
        %544 = vmatpush1.bf16.xpose.msra.mxu0 0
        %545 = vmatprep.subr.bf16.mxu0 0
        %546 = vmatpush1.bf16.xpose.msra.mxu0 0
        %547 = vmatprep.subr.bf16.mxu0 0
        %548 = vmatpush1.bf16.xpose.msra.mxu0 0
        %549 = vmatprep.subr.bf16.mxu0 0
        %550 = vmatpush1.bf16.xpose.msra.mxu0 0
        %551 = vmatprep.subr.bf16.mxu0 0
        %552 = vmatpush1.bf16.xpose.msra.mxu0 0
        %553 = vmatprep.subr.bf16.mxu0 0
        %554 = vmatpush1.bf16.xpose.msra.mxu0 0
        %555 = vmatprep.subr.bf16.mxu0 0
        %556 = vmatpush1.bf16.xpose.msra.mxu0 0
        %557 = vmatprep.subr.bf16.mxu0 0
        %558 = vmatpush1.bf16.xpose.msra.mxu0 0
        %559 = vmatprep.subr.bf16.mxu0 0
        %560 = vmatpush1.bf16.xpose.msra.mxu0 0
        %561 = vmatprep.mubr.bf16.mxu0 0
        %562 = vmatmul.mubr.bf16.gmra.mrb[0].mxu0 %v524
        %v563 = vpop.f32.mrb[0].mxu0
        %v564 = vadd.f32 %v518, %v563
        %v565 = vpop.f32.mrb[0].mxu0
        %v566 = vpop.f32.mrb[0].mxu0
        %v567 = vpop.f32.mrb[0].mxu0
        %568 = vdwg.mxu0
        %v569 = vsel %vm407, %v564, -inf
        %570 = vmax.xlane.f32.xlu0 %v569
        %v571 = vpop.xlane.xlu0 %570
        %v572 = vsub.f32 %v564, %v571
        %v573 = vmul.f32 %v572, 1.442695
        %v574 = vpow.pop %v573
        %v575 = vsel %vm407, %v574, 0.0
        %576 = vadd.xlane.f32.xlu0 %v575
        %v577 = vpop.xlane.xlu0 %576
        %v578 = vpack.c.bf16 %v574, %v574
        %579 = vrot.lane.b32.xlu0 %v401, 56
        %v580 = vpop.permute.xlu0 %579
        %v582 = vsel %vm407, %v578, 0
        %v585 = vsel %vm469, %v580, 0
        %587 = vmatprep.subr.bf16.mxu0 0
        %588 = vmatpush1.bf16.msra.mxu0 %v585
        %589 = vmatprep.subr.bf16.mxu0 0
        %590 = vmatpush1.bf16.msra.mxu0 0
        %591 = vmatprep.subr.bf16.mxu0 0
        %592 = vmatpush1.bf16.msra.mxu0 0
        %593 = vmatprep.subr.bf16.mxu0 0
        %594 = vmatpush1.bf16.msra.mxu0 0
        %595 = vmatprep.subr.bf16.mxu0 0
        %596 = vmatpush1.bf16.msra.mxu0 0
        %597 = vmatprep.subr.bf16.mxu0 0
        %598 = vmatpush1.bf16.msra.mxu0 0
        %599 = vmatprep.subr.bf16.mxu0 0
        %600 = vmatpush1.bf16.msra.mxu0 0
        %601 = vmatprep.subr.bf16.mxu0 0
        %602 = vmatpush1.bf16.msra.mxu0 0
        %603 = vmatprep.subr.bf16.mxu0 0
        %604 = vmatpush1.bf16.msra.mxu0 0
        %605 = vmatprep.subr.bf16.mxu0 0
        %606 = vmatpush1.bf16.msra.mxu0 0
        %607 = vmatprep.subr.bf16.mxu0 0
        %608 = vmatpush1.bf16.msra.mxu0 0
        %609 = vmatprep.subr.bf16.mxu0 0
        %610 = vmatpush1.bf16.msra.mxu0 0
        %611 = vmatprep.subr.bf16.mxu0 0
        %612 = vmatpush1.bf16.msra.mxu0 0
        %613 = vmatprep.subr.bf16.mxu0 0
        %614 = vmatpush1.bf16.msra.mxu0 0
        %615 = vmatprep.subr.bf16.mxu0 0
        %616 = vmatpush1.bf16.msra.mxu0 0
        %617 = vmatprep.subr.bf16.mxu0 0
        %618 = vmatpush1.bf16.msra.mxu0 0
        %619 = vmatprep.mubr.bf16.mxu0 0
        %620 = vmatmul.mubr.bf16.gmra.mrb[0].mxu0 %v582
        %v621 = vpop.f32.mrb[0].mxu0
        %v622 = vadd.f32 0.0, %v621
        %v623 = vpop.f32.mrb[0].mxu0
        %v624 = vpop.f32.mrb[0].mxu0
        %v625 = vpop.f32.mrb[0].mxu0
        %626 = vdwg.mxu0
        %v627 = vrcp.pop %v577
        %v628 = vmul.f32 %v622, %v627
        %v629 = vpack.c.bf16 %v628, %v628
        %s630 = scalar_lea.vmem %s327, 8
        %v631 = vld [vmem:[%s630] sm:$0xf]
        %v632 = vunpack.c.l.bf16 %v631
        %633 = vrot.lane.b32.xlu0 %v401, 112
        %v634 = vpop.permute.xlu0 %633
        %635 = vrot.lane.b32.xlu0 %v401, 80
        %v636 = vpop.permute.xlu0 %635
        %v638 = vsel %vm407, %v634, 0
        %v641 = vsel %vm407, %v636, 0
        %643 = vmatprep.subr.bf16.mxu0 0
        %644 = vmatpush1.bf16.xpose.msra.mxu0 %v641
        %645 = vmatprep.subr.bf16.mxu0 0
        %646 = vmatpush1.bf16.xpose.msra.mxu0 0
        %647 = vmatprep.subr.bf16.mxu0 0
        %648 = vmatpush1.bf16.xpose.msra.mxu0 0
        %649 = vmatprep.subr.bf16.mxu0 0
        %650 = vmatpush1.bf16.xpose.msra.mxu0 0
        %651 = vmatprep.subr.bf16.mxu0 0
        %652 = vmatpush1.bf16.xpose.msra.mxu0 0
        %653 = vmatprep.subr.bf16.mxu0 0
        %654 = vmatpush1.bf16.xpose.msra.mxu0 0
        %655 = vmatprep.subr.bf16.mxu0 0
        %656 = vmatpush1.bf16.xpose.msra.mxu0 0
        %657 = vmatprep.subr.bf16.mxu0 0
        %658 = vmatpush1.bf16.xpose.msra.mxu0 0
        %659 = vmatprep.subr.bf16.mxu0 0
        %660 = vmatpush1.bf16.xpose.msra.mxu0 0
        %661 = vmatprep.subr.bf16.mxu0 0
        %662 = vmatpush1.bf16.xpose.msra.mxu0 0
        %663 = vmatprep.subr.bf16.mxu0 0
        %664 = vmatpush1.bf16.xpose.msra.mxu0 0
        %665 = vmatprep.subr.bf16.mxu0 0
        %666 = vmatpush1.bf16.xpose.msra.mxu0 0
        %667 = vmatprep.subr.bf16.mxu0 0
        %668 = vmatpush1.bf16.xpose.msra.mxu0 0
        %669 = vmatprep.subr.bf16.mxu0 0
        %670 = vmatpush1.bf16.xpose.msra.mxu0 0
        %671 = vmatprep.subr.bf16.mxu0 0
        %672 = vmatpush1.bf16.xpose.msra.mxu0 0
        %673 = vmatprep.subr.bf16.mxu0 0
        %674 = vmatpush1.bf16.xpose.msra.mxu0 0
        %675 = vmatprep.mubr.bf16.mxu0 0
        %676 = vmatmul.mubr.bf16.gmra.mrb[0].mxu0 %v638
        %v677 = vpop.f32.mrb[0].mxu0
        %v678 = vadd.f32 %v632, %v677
        %v679 = vpop.f32.mrb[0].mxu0
        %v680 = vpop.f32.mrb[0].mxu0
        %v681 = vpop.f32.mrb[0].mxu0
        %682 = vdwg.mxu0
        %v683 = vsel %vm407, %v678, -inf
        %684 = vmax.xlane.f32.xlu0 %v683
        %v685 = vpop.xlane.xlu0 %684
        %v686 = vsub.f32 %v678, %v685
        %v687 = vmul.f32 %v686, 1.442695
        %v688 = vpow.pop %v687
        %v689 = vsel %vm407, %v688, 0.0
        %690 = vadd.xlane.f32.xlu0 %v689
        %v691 = vpop.xlane.xlu0 %690
        %v692 = vpack.c.bf16 %v688, %v688
        %693 = vrot.lane.b32.xlu0 %v401, 48
        %v694 = vpop.permute.xlu0 %693
        %v696 = vsel %vm407, %v692, 0
        %v699 = vsel %vm469, %v694, 0
        %701 = vmatprep.subr.bf16.mxu0 0
        %702 = vmatpush1.bf16.msra.mxu0 %v699
        %703 = vmatprep.subr.bf16.mxu0 0
        %704 = vmatpush1.bf16.msra.mxu0 0
        %705 = vmatprep.subr.bf16.mxu0 0
        %706 = vmatpush1.bf16.msra.mxu0 0
        %707 = vmatprep.subr.bf16.mxu0 0
        %708 = vmatpush1.bf16.msra.mxu0 0
        %709 = vmatprep.subr.bf16.mxu0 0
        %710 = vmatpush1.bf16.msra.mxu0 0
        %711 = vmatprep.subr.bf16.mxu0 0
        %712 = vmatpush1.bf16.msra.mxu0 0
        %713 = vmatprep.subr.bf16.mxu0 0
        %714 = vmatpush1.bf16.msra.mxu0 0
        %715 = vmatprep.subr.bf16.mxu0 0
        %716 = vmatpush1.bf16.msra.mxu0 0
        %717 = vmatprep.subr.bf16.mxu0 0
        %718 = vmatpush1.bf16.msra.mxu0 0
        %719 = vmatprep.subr.bf16.mxu0 0
        %720 = vmatpush1.bf16.msra.mxu0 0
        %721 = vmatprep.subr.bf16.mxu0 0
        %722 = vmatpush1.bf16.msra.mxu0 0
        %723 = vmatprep.subr.bf16.mxu0 0
        %724 = vmatpush1.bf16.msra.mxu0 0
        %725 = vmatprep.subr.bf16.mxu0 0
        %726 = vmatpush1.bf16.msra.mxu0 0
        %727 = vmatprep.subr.bf16.mxu0 0
        %728 = vmatpush1.bf16.msra.mxu0 0
        %729 = vmatprep.subr.bf16.mxu0 0
        %730 = vmatpush1.bf16.msra.mxu0 0
        %731 = vmatprep.subr.bf16.mxu0 0
        %732 = vmatpush1.bf16.msra.mxu0 0
        %733 = vmatprep.mubr.bf16.mxu0 0
        %734 = vmatmul.mubr.bf16.gmra.mrb[0].mxu0 %v696
        %v735 = vpop.f32.mrb[0].mxu0
        %v736 = vadd.f32 0.0, %v735
        %v737 = vpop.f32.mrb[0].mxu0
        %v738 = vpop.f32.mrb[0].mxu0
        %v739 = vpop.f32.mrb[0].mxu0
        %740 = vdwg.mxu0
        %v741 = vrcp.pop %v691
        %v742 = vmul.f32 %v736, %v741
        %v743 = vpack.c.bf16 %v742, %v742
        %s744 = scalar_lea.vmem %s327, 12
        %v745 = vld [vmem:[%s744] sm:$0xf]
        %v746 = vunpack.c.l.bf16 %v745
        %747 = vrot.lane.b32.xlu0 %v401, 104
        %v748 = vpop.permute.xlu0 %747
        %749 = vrot.lane.b32.xlu0 %v401, 72
        %v750 = vpop.permute.xlu0 %749
        %v752 = vsel %vm407, %v748, 0
        %v755 = vsel %vm407, %v750, 0
        %757 = vmatprep.subr.bf16.mxu0 0
        %758 = vmatpush1.bf16.xpose.msra.mxu0 %v755
        %759 = vmatprep.subr.bf16.mxu0 0
        %760 = vmatpush1.bf16.xpose.msra.mxu0 0
        %761 = vmatprep.subr.bf16.mxu0 0
        %762 = vmatpush1.bf16.xpose.msra.mxu0 0
        %763 = vmatprep.subr.bf16.mxu0 0
        %764 = vmatpush1.bf16.xpose.msra.mxu0 0
        %765 = vmatprep.subr.bf16.mxu0 0
        %766 = vmatpush1.bf16.xpose.msra.mxu0 0
        %767 = vmatprep.subr.bf16.mxu0 0
        %768 = vmatpush1.bf16.xpose.msra.mxu0 0
        %769 = vmatprep.subr.bf16.mxu0 0
        %770 = vmatpush1.bf16.xpose.msra.mxu0 0
        %771 = vmatprep.subr.bf16.mxu0 0
        %772 = vmatpush1.bf16.xpose.msra.mxu0 0
        %773 = vmatprep.subr.bf16.mxu0 0
        %774 = vmatpush1.bf16.xpose.msra.mxu0 0
        %775 = vmatprep.subr.bf16.mxu0 0
        %776 = vmatpush1.bf16.xpose.msra.mxu0 0
        %777 = vmatprep.subr.bf16.mxu0 0
        %778 = vmatpush1.bf16.xpose.msra.mxu0 0
        %779 = vmatprep.subr.bf16.mxu0 0
        %780 = vmatpush1.bf16.xpose.msra.mxu0 0
        %781 = vmatprep.subr.bf16.mxu0 0
        %782 = vmatpush1.bf16.xpose.msra.mxu0 0
        %783 = vmatprep.subr.bf16.mxu0 0
        %784 = vmatpush1.bf16.xpose.msra.mxu0 0
        %785 = vmatprep.subr.bf16.mxu0 0
        %786 = vmatpush1.bf16.xpose.msra.mxu0 0
        %787 = vmatprep.subr.bf16.mxu0 0
        %788 = vmatpush1.bf16.xpose.msra.mxu0 0
        %789 = vmatprep.mubr.bf16.mxu0 0
        %790 = vmatmul.mubr.bf16.gmra.mrb[0].mxu0 %v752
        %v791 = vpop.f32.mrb[0].mxu0
        %v792 = vadd.f32 %v746, %v791
        %v793 = vpop.f32.mrb[0].mxu0
        %v794 = vpop.f32.mrb[0].mxu0
        %v795 = vpop.f32.mrb[0].mxu0
        %796 = vdwg.mxu0
        %v797 = vsel %vm407, %v792, -inf
        %798 = vmax.xlane.f32.xlu0 %v797
        %v799 = vpop.xlane.xlu0 %798
        %v800 = vsub.f32 %v792, %v799
        %v801 = vmul.f32 %v800, 1.442695
        %v802 = vpow.pop %v801
        %v803 = vsel %vm407, %v802, 0.0
        %804 = vadd.xlane.f32.xlu0 %v803
        %v805 = vpop.xlane.xlu0 %804
        %v806 = vpack.c.bf16 %v802, %v802
        %807 = vrot.lane.b32.xlu0 %v401, 40
        %v808 = vpop.permute.xlu0 %807
        %v810 = vsel %vm407, %v806, 0
        %v813 = vsel %vm469, %v808, 0
        %815 = vmatprep.subr.bf16.mxu0 0
        %816 = vmatpush1.bf16.msra.mxu0 %v813
        %817 = vmatprep.subr.bf16.mxu0 0
        %818 = vmatpush1.bf16.msra.mxu0 0
        %819 = vmatprep.subr.bf16.mxu0 0
        %820 = vmatpush1.bf16.msra.mxu0 0
        %821 = vmatprep.subr.bf16.mxu0 0
        %822 = vmatpush1.bf16.msra.mxu0 0
        %823 = vmatprep.subr.bf16.mxu0 0
        %824 = vmatpush1.bf16.msra.mxu0 0
        %825 = vmatprep.subr.bf16.mxu0 0
        %826 = vmatpush1.bf16.msra.mxu0 0
        %827 = vmatprep.subr.bf16.mxu0 0
        %828 = vmatpush1.bf16.msra.mxu0 0
        %829 = vmatprep.subr.bf16.mxu0 0
        %830 = vmatpush1.bf16.msra.mxu0 0
        %831 = vmatprep.subr.bf16.mxu0 0
        %832 = vmatpush1.bf16.msra.mxu0 0
        %833 = vmatprep.subr.bf16.mxu0 0
        %834 = vmatpush1.bf16.msra.mxu0 0
        %835 = vmatprep.subr.bf16.mxu0 0
        %836 = vmatpush1.bf16.msra.mxu0 0
        %837 = vmatprep.subr.bf16.mxu0 0
        %838 = vmatpush1.bf16.msra.mxu0 0
        %839 = vmatprep.subr.bf16.mxu0 0
        %840 = vmatpush1.bf16.msra.mxu0 0
        %841 = vmatprep.subr.bf16.mxu0 0
        %842 = vmatpush1.bf16.msra.mxu0 0
        %843 = vmatprep.subr.bf16.mxu0 0
        %844 = vmatpush1.bf16.msra.mxu0 0
        %845 = vmatprep.subr.bf16.mxu0 0
        %846 = vmatpush1.bf16.msra.mxu0 0
        %847 = vmatprep.mubr.bf16.mxu0 0
        %848 = vmatmul.mubr.bf16.gmra.mrb[0].mxu0 %v810
        %v849 = vpop.f32.mrb[0].mxu0
        %v850 = vadd.f32 0.0, %v849
        %v851 = vpop.f32.mrb[0].mxu0
        %v852 = vpop.f32.mrb[0].mxu0
        %v853 = vpop.f32.mrb[0].mxu0
        %854 = vdwg.mxu0
        %v855 = vrcp.pop %v805
        %v856 = vmul.f32 %v850, %v855
        %v857 = vpack.c.bf16 %v856, %v856
        %859 = vrot.lane.b32.xlu0 %v629, 8
        %v860 = vpop.permute.xlu0 %859
        %862 = vrot.lane.b32.xlu0 %v743, 16
        %v863 = vpop.permute.xlu0 %862
        %865 = vrot.lane.b32.xlu0 %v857, 24
        %v866 = vpop.permute.xlu0 %865
        %v869 = vsel %vm407, %v515, %v860
        %vm870 = vcmask 130048
        %v872 = vsel %vm870, %v869, %v863
        %vm873 = vcmask 195584
        %v875 = vsel %vm873, %v872, %v866
        %s877 = smul.addr %s29, 4
        %s878 = scalar_lea.vmem [#allocation2], %s877
        %vm879 = vcmask 257024
        %880 = vst.msk [vmem:[%s878] sm:$0xf] %vm879, %v875
        %p881 = scmp.eq.s32.totalorder %s29, 0
        // Predicated region
        $region57: #{tpu_custom_call.1} parent=43 // pred_check
          %p882 = pneg %p881
        $region58: #{tpu_custom_call.1} parent=43 // pred_check_branch
          %884 = sbr.rel (%p882) target = $region60
        $region59: #{tpu_custom_call.1} parent=43 // pred_region
          %v885 = vld [vmem:[#allocation2] sm:$0xf]
          %v886 = vld [vmem:[#allocation8] sm:$0xf]
          %v887 = vld [vmem:[#allocation8 + $0x4] sm:$0xf]
          %v888 = vld [vmem:[#allocation8 + $0x8] sm:$0xf]
          %v889 = vld [vmem:[#allocation8 + $0xc] sm:$0xf]
          %v890 = vld [vmem:[%s4] sm:$0x1]
          %v892 = vlaneseq
          %v893 = vshrl.u32 %v892, 7
          %v894 = vsub.s32 0, %v893
          %v895 = vrot.slane %v890, %v894
          %v901 = vunpack.c.l.b16 %v886
          %v902 = vunpack.c.l.b16 %v887
          %v903 = vunpack.c.l.b16 %v888
          %v904 = vunpack.c.l.b16 %v889
          %v905 = vpack.c.b16 %v902, %v901
          %v906 = vpack.c.b16 %v904, %v903
          %v910 = vsel %vm357, %v885, 0
          %912 = vmatprep.subr.bf16.mxu0 0
          %913 = vmatpush1.bf16.msra.mxu0 %v905
          %914 = vmatprep.subr.bf16.mxu0 0
          %915 = vmatpush1.bf16.msra.mxu0 %v906
          %916 = vmatprep.subr.bf16.mxu0 0
          %917 = vmatpush1.bf16.msra.mxu0 0
          %918 = vmatprep.subr.bf16.mxu0 0
          %919 = vmatpush1.bf16.msra.mxu0 0
          %920 = vmatprep.subr.bf16.mxu0 0
          %921 = vmatpush1.bf16.msra.mxu0 0
          %922 = vmatprep.subr.bf16.mxu0 0
          %923 = vmatpush1.bf16.msra.mxu0 0
          %924 = vmatprep.subr.bf16.mxu0 0
          %925 = vmatpush1.bf16.msra.mxu0 0
          %926 = vmatprep.subr.bf16.mxu0 0
          %927 = vmatpush1.bf16.msra.mxu0 0
          %928 = vmatprep.subr.bf16.mxu0 0
          %929 = vmatpush1.bf16.msra.mxu0 0
          %930 = vmatprep.subr.bf16.mxu0 0
          %931 = vmatpush1.bf16.msra.mxu0 0
          %932 = vmatprep.subr.bf16.mxu0 0
          %933 = vmatpush1.bf16.msra.mxu0 0
          %934 = vmatprep.subr.bf16.mxu0 0
          %935 = vmatpush1.bf16.msra.mxu0 0
          %936 = vmatprep.subr.bf16.mxu0 0
          %937 = vmatpush1.bf16.msra.mxu0 0
          %938 = vmatprep.subr.bf16.mxu0 0
          %939 = vmatpush1.bf16.msra.mxu0 0
          %940 = vmatprep.subr.bf16.mxu0 0
          %941 = vmatpush1.bf16.msra.mxu0 0
          %942 = vmatprep.subr.bf16.mxu0 0
          %943 = vmatpush1.bf16.msra.mxu0 0
          %944 = vmatprep.mubr.bf16.mxu0 0
          %945 = vmatmul.mubr.bf16.gmra.mrb[0].mxu0 %v910
          %v946 = vpop.f32.mrb[0].mxu0
          %v947 = vadd.f32 %v895, %v946
          %v948 = vpop.f32.mrb[0].mxu0
          %v949 = vpop.f32.mrb[0].mxu0
          %v950 = vpop.f32.mrb[0].mxu0
          %951 = vdwg.mxu0
          %952 = vst.msk [vmem:[%s322] sm:$0xff] %vm357, %v947
        $region60: #{tpu_custom_call.1} parent=43 // pred_fallthru
          _
        %s953 = sand.u32 %s180, 1
        %s954 = scalar_lea.sflag [#allocation5], %s953
        %s955 = sand.u32 %s180, 1
        %s956 = smul.addr %s955, 8
        %s957 = scalar_lea.vmem [#allocation9], %s956
        // Predicated region
        $region61: #{tpu_custom_call.1} parent=43 // pred_check
          %p958 = pneg %p190
        $region62: #{tpu_custom_call.1} parent=43 // pred_check_branch
          %960 = sbr.rel (%p958) target = $region64
        $region63: #{tpu_custom_call.1} parent=43 // pred_region
          %s962 = ssub.s32 128, 128
          %963 = vsyncadd %s954, %s962
          %s964 = smul.addr %s28, 128
          %s965 = scalar_lea.hbm %s6, %s964
          %s967 = sshll.u32 %s957, 4
          %s968 = int_to_ptr.vmem [resolvable:$true] %s967
          %970 = dma.vmem_to_hbm [thread:$0]  %s968, 128, %s965, %s954
        $region64: #{tpu_custom_call.1} parent=43 // pred_fallthru
          _
      $region44: #{tpu_custom_call.1} parent=5 // pred_fallthru
        _
      %p971 = scmp.le.s32.totalorder 2, %s19
      // Predicated region
      $region65: #{tpu_custom_call.1} parent=5 // pred_check
        %p972 = pneg %p971
      $region66: #{tpu_custom_call.1} parent=5 // pred_check_branch
        %974 = sbr.rel (%p972) target = $region68
      $region67: #{tpu_custom_call.1} parent=5 // pred_region
        %s975 = ssub.s32 %s19, 2
        // Predicated region
        $region69: #{tpu_custom_call.1} parent=67 // pred_check
          %p976 = pneg %p196
        $region70: #{tpu_custom_call.1} parent=67 // pred_check_branch
          %978 = sbr.rel (%p976) target = $region72
        $region71: #{tpu_custom_call.1} parent=67 // pred_region
          %s979 = sand.u32 %s181, 1
          %s980 = scalar_lea.sflag [#allocation5], %s979
          %s981 = sand.u32 %s181, 1
          %s982 = smul.addr %s981, 8
          %s983 = scalar_lea.vmem [#allocation9], %s982
          %984 = dma.done %s980, 128
        $region72: #{tpu_custom_call.1} parent=67 // pred_fallthru
          _
      $region68: #{tpu_custom_call.1} parent=5 // pred_fallthru
        _
    $region6: #{tpu_custom_call.1} parent=1 // loop_footer
      %s23 = sadd.s32 1, %s19
    $region7: #{tpu_custom_call.1} parent=1 // loop_footer_branch
      %18 = sbr.rel target = $region3
    $region8: #{tpu_custom_call.1} parent=1 // loop_exit
      _
    %985 = vsyncpa [#allocation4], 1
    %s986 = scalar_lea.sflag [#allocation4], 1
    %987 = vsyncpa %s986, 1
    %988 = vsyncpa [#allocation7], 1
    %989 = vsyncpa [#allocation5], 1
    %s990 = scalar_lea.sflag [#allocation5], 1
    %991 = vsyncpa %s990, 1

</llo_original>
